<compile_context>
chip_gen: v5e
topology: v5e:2x2
jax: 0.10.0
libtpu: 0.0.40
codegen_flags: <defaults>
</compile_context>

<pallas_src>
import jax
import jax.numpy as jnp
from jax import lax
from jax.experimental import pallas as pl
from jax.experimental.pallas import tpu as pltpu

LANE = 128
SUBLANE = 8
GRAIN = SUBLANE * LANE            # 1024-element padding granularity
MAX_BLOCK_ROWS = 4096             # (4096, 128) f32 = 2 MiB per streamed block
NUM_CHUNKS = 2                    # leading "parallel" grid axis (2 TCs on v7x)
MASK_THRESHOLD = 0.001


def _cdiv(a, b):
    return -(-a // b)


def _round_up(x, m):
    return ((x + m - 1) // m) * m


# ----------------------------- Pallas kernel ------------------------------

def _make_sse_kernel(masked, ragged, rows, block_rows, steps_per_chunk):
    """Kernel computing sum(((a - b) * keep)**2) over one streamed pair.

    All specialization (mask vs. no mask, ragged-tail handling) is decided at
    trace time, so the unmasked majority pays only sub + mul + add per vreg.
    """

    def kernel(a_ref, b_ref, out_ref):
        c = pl.program_id(0)           # parallel chunk
        s = pl.program_id(1)           # reduction step within the chunk

        @pl.when(s == 0)
        def _():
            out_ref[...] = jnp.zeros_like(out_ref)

        a = a_ref[...].astype(jnp.float32)
        b = b_ref[...].astype(jnp.float32)
        d = a - b
        if masked:
            # (target > 0.001) validity mask of the reference MSE.
            d = jnp.where(a > MASK_THRESHOLD, d, 0.0)
        if ragged:
            # The globally-last block hangs over the end of the array; zero
            # whatever the boundary DMA left in the out-of-range rows.
            blk = c * steps_per_chunk + s
            row = blk * block_rows + lax.broadcasted_iota(jnp.int32, d.shape, 0)
            d = jnp.where(row < rows, d, 0.0)
        sq = d * d
        # Fold the block into one (8, 128) vreg (pure vreg-wise adds, no
        # cross-lane work) and accumulate into the VMEM-resident output block.
        out_ref[...] += jnp.sum(sq.reshape(-1, SUBLANE, LANE), axis=0)

    return kernel


# ------------------------------ JAX glue ----------------------------------

def _pair_sse(a, b, masked):
    """sum(((a - b) * keep)**2) over all elements; keep = (a > 0.001) if masked."""
    n = int(a.size)
    af = a.reshape(-1)
    bf = b.reshape(-1)

    # Pad (zeros) only up to 1024-element granularity so rows is a multiple of
    # the 8-sublane vreg height.  Zero padding is exact: masked pairs fail the
    # a > 0.001 test; unmasked pairs get diff == 0.
    n_pad = _round_up(max(n, GRAIN), GRAIN)
    if n_pad != n:
        af = jnp.pad(af, (0, n_pad - n))
        bf = jnp.pad(bf, (0, n_pad - n))
    rows = n_pad // LANE
    a2 = af.reshape(rows, LANE)
    b2 = bf.reshape(rows, LANE)

    block_rows = min(rows, MAX_BLOCK_ROWS)          # both multiples of 8
    total_steps = _cdiv(rows, block_rows)
    ragged = (rows % block_rows) != 0
    if total_steps >= NUM_CHUNKS and total_steps % NUM_CHUNKS == 0:
        num_chunks = NUM_CHUNKS
    else:
        num_chunks = 1
    steps = total_steps // num_chunks

    kernel = _make_sse_kernel(masked, ragged, rows, block_rows, steps)

    data_spec = pl.BlockSpec(
        (block_rows, LANE),
        lambda c, s, _spc=steps: (c * _spc + s, 0))

    partials = pl.pallas_call(
        kernel,
        out_shape=jax.ShapeDtypeStruct((num_chunks * SUBLANE, LANE),
                                       jnp.float32),
        grid_spec=pltpu.PrefetchScalarGridSpec(
            num_scalar_prefetch=0,
            grid=(num_chunks, steps),
            in_specs=[data_spec, data_spec],
            out_specs=pl.BlockSpec((SUBLANE, LANE), lambda c, s: (c, 0)),
        ),
        compiler_params=pltpu.CompilerParams(
            dimension_semantics=("parallel", "arbitrary"),
        ),
    )(a2, b2)

    # Tiny final cross-lane reduction in the wrapper.
    return jnp.sum(partials)


def mse_and_sci_loss(outputs, target, inlist, ilist):
    # loss1: masked MSE over (outputs, target); mean over ALL elements.
    loss1 = _pair_sse(target, outputs, masked=True) / float(target.size)

    # loss2: 0.3 * sum_i SCI(inlist[i], ilist[i]); fidelity term only.
    # TODO(synk): SCI LossFunction smoothness/TV term omitted — its definition
    # is not provided in the reference module.
    loss2 = 0.0
    for inp, illu in zip(inlist, ilist):
        loss2 = loss2 + 1.5 * _pair_sse(illu, inp, masked=False) / float(illu.size)

    return loss1 + 0.3 * loss2


def _reference_loss(outputs, target, inlist, ilist):
    m = (target > MASK_THRESHOLD).astype(jnp.float32)
    loss1 = jnp.mean((target * m - outputs * m) ** 2)
    loss2 = 0.0
    for inp, illu in zip(inlist, ilist):
        loss2 = loss2 + 1.5 * jnp.mean((illu - inp) ** 2)
    return loss1 + 0.3 * loss2


# --------------------------------- main ------------------------------------

if __name__ == "__main__":
    key = jax.random.PRNGKey(0)
    keys = jax.random.split(key, 8)

    # outputs / target: depth-style maps (N, C, H, W) = (2, 1, 16, 16)
    outputs = jax.random.uniform(keys[0], (2, 1, 16, 16), jnp.float32)
    target = jax.random.uniform(keys[1], (2, 1, 16, 16), jnp.float32)

    # inlist / ilist: 3 pairs of illumination tensors (2, 3, 16, 16)
    inlist = [jax.random.uniform(keys[2 + i], (2, 3, 16, 16), jnp.float32)
              for i in range(3)]
    ilist = [jax.random.uniform(keys[5 + i], (2, 3, 16, 16), jnp.float32)
             for i in range(3)]

    loss_fn = jax.jit(mse_and_sci_loss)
    loss = loss_fn(outputs, target, inlist, ilist)
    jax.block_until_ready(loss)

    ref = _reference_loss(outputs, target, inlist, ilist)
    assert jnp.allclose(loss, ref, rtol=2e-4, atol=1e-6), (loss, ref)

    print("KERNEL_OK")
</pallas_src>

<mosaic_0001>
module attributes {stable_mosaic.version = 11 : i64} {
  func.func @kernel(%arg0: i32, %arg1: i32, %arg2: memref<16x128xf32, #tpu.memory_space<vmem>>, %arg3: memref<16x128xf32, #tpu.memory_space<vmem>>, %arg4: memref<8x128xf32, #tpu.memory_space<vmem>>) attributes {dimension_semantics = [#tpu.dimension_semantics<parallel>, #tpu.dimension_semantics<arbitrary>], iteration_bounds = array<i64: 1, 1>, scalar_prefetch = 0 : i64, scratch_operands = 0 : i64, tpu.core_type = #tpu.core_type<tc>, window_params = [{transform_indices = @transform_0, window_bounds = array<i64: 16, 128>}, {transform_indices = @transform_1, window_bounds = array<i64: 16, 128>}, {transform_indices = @transform_2, window_bounds = array<i64: 8, 128>}]} {
    %c0_i32 = arith.constant 0 : i32
    %0 = arith.cmpi eq, %arg1, %c0_i32 : i32
    %1 = arith.extui %0 : i1 to i32
    %c0_i32_0 = arith.constant 0 : i32
    %2 = arith.cmpi ne, %1, %c0_i32_0 : i32
    scf.if %2 {
      %cst_8 = arith.constant 0.000000e+00 : f32
      %12 = vector.broadcast %cst_8 : f32 to vector<8x128xf32>
      %c0_9 = arith.constant 0 : index
      %c0_10 = arith.constant 0 : index
      %13 = vector.load %arg4[%c0_9, %c0_10] : memref<8x128xf32, #tpu.memory_space<vmem>>, vector<8x128xf32>
      tpu.vector_store %arg4[%c0_9, %c0_10], %12 {strides = array<i32>} : memref<8x128xf32, #tpu.memory_space<vmem>>, vector<8x128xf32>,
    } else {
    }
    %c0 = arith.constant 0 : index
    %c0_1 = arith.constant 0 : index
    %3 = vector.load %arg2[%c0, %c0_1] : memref<16x128xf32, #tpu.memory_space<vmem>>, vector<16x128xf32>
    %c0_2 = arith.constant 0 : index
    %c0_3 = arith.constant 0 : index
    %4 = vector.load %arg3[%c0_2, %c0_3] : memref<16x128xf32, #tpu.memory_space<vmem>>, vector<16x128xf32>
    %5 = arith.subf %3, %4 : vector<16x128xf32>
    %6 = arith.mulf %5, %5 : vector<16x128xf32>
    %c0_4 = arith.constant 0 : index
    %c0_5 = arith.constant 0 : index
    %7 = vector.load %arg4[%c0_4, %c0_5] : memref<8x128xf32, #tpu.memory_space<vmem>>, vector<8x128xf32>
    %8 = vector.shape_cast %6 : vector<16x128xf32> to vector<2x8x128xf32>
    %cst = arith.constant dense<0.000000e+00> : vector<8x128xf32>
    %9 = vector.multi_reduction <add>, %8, %cst [0] : vector<2x8x128xf32> to vector<8x128xf32>
    %10 = arith.addf %7, %9 : vector<8x128xf32>
    %c0_6 = arith.constant 0 : index
    %c0_7 = arith.constant 0 : index
    %11 = vector.load %arg4[%c0_6, %c0_7] : memref<8x128xf32, #tpu.memory_space<vmem>>, vector<8x128xf32>
    tpu.vector_store %arg4[%c0_6, %c0_7], %10 {strides = array<i32>} : memref<8x128xf32, #tpu.memory_space<vmem>>, vector<8x128xf32>,
    return
  }
  func.func @transform_0(%arg0: i32, %arg1: i32) -> (i32, i32) {
    %c1_i32 = arith.constant 1 : i32
    %0 = arith.muli %arg0, %c1_i32 : i32
    %1 = arith.addi %0, %arg1 : i32
    %c0_i32 = arith.constant 0 : i32
    %c0_i32_0 = arith.constant 0 : i32
    return %1, %c0_i32 : i32, i32
  }
  func.func @transform_1(%arg0: i32, %arg1: i32) -> (i32, i32) {
    %c1_i32 = arith.constant 1 : i32
    %0 = arith.muli %arg0, %c1_i32 : i32
    %1 = arith.addi %0, %arg1 : i32
    %c0_i32 = arith.constant 0 : i32
    %c0_i32_0 = arith.constant 0 : i32
    return %1, %c0_i32 : i32, i32
  }
  func.func @transform_2(%arg0: i32, %arg1: i32) -> (i32, i32) {
    %c0_i32 = arith.constant 0 : i32
    %c0_i32_0 = arith.constant 0 : i32
    return %arg0, %c0_i32 : i32, i32
  }
}

module attributes {stable_mosaic.version = 11 : i64} {
  func.func @kernel(%arg0: i32, %arg1: i32, %arg2: memref<8x128xf32, #tpu.memory_space<vmem>>, %arg3: memref<8x128xf32, #tpu.memory_space<vmem>>, %arg4: memref<8x128xf32, #tpu.memory_space<vmem>>) attributes {dimension_semantics = [#tpu.dimension_semantics<parallel>, #tpu.dimension_semantics<arbitrary>], iteration_bounds = array<i64: 1, 1>, scalar_prefetch = 0 : i64, scratch_operands = 0 : i64, tpu.core_type = #tpu.core_type<tc>, window_params = [{transform_indices = @transform_0, window_bounds = array<i64: 8, 128>}, {transform_indices = @transform_1, window_bounds = array<i64: 8, 128>}, {transform_indices = @transform_2, window_bounds = array<i64: 8, 128>}]} {
    %c0_i32 = arith.constant 0 : i32
    %0 = arith.cmpi eq, %arg1, %c0_i32 : i32
    %1 = arith.extui %0 : i1 to i32
    %c0_i32_0 = arith.constant 0 : i32
    %2 = arith.cmpi ne, %1, %c0_i32_0 : i32
    scf.if %2 {
      %cst_10 = arith.constant 0.000000e+00 : f32
      %16 = vector.broadcast %cst_10 : f32 to vector<8x128xf32>
      %c0_11 = arith.constant 0 : index
      %c0_12 = arith.constant 0 : index
      %17 = vector.load %arg4[%c0_11, %c0_12] : memref<8x128xf32, #tpu.memory_space<vmem>>, vector<8x128xf32>
      tpu.vector_store %arg4[%c0_11, %c0_12], %16 {strides = array<i32>} : memref<8x128xf32, #tpu.memory_space<vmem>>, vector<8x128xf32>,
    } else {
    }
    %c0 = arith.constant 0 : index
    %c0_1 = arith.constant 0 : index
    %3 = vector.load %arg2[%c0, %c0_1] : memref<8x128xf32, #tpu.memory_space<vmem>>, vector<8x128xf32>
    %c0_2 = arith.constant 0 : index
    %c0_3 = arith.constant 0 : index
    %4 = vector.load %arg3[%c0_2, %c0_3] : memref<8x128xf32, #tpu.memory_space<vmem>>, vector<8x128xf32>
    %5 = arith.subf %3, %4 : vector<8x128xf32>
    %cst = arith.constant 1.000000e-03 : f32
    %6 = vector.broadcast %cst : f32 to vector<8x128xf32>
    %7 = arith.cmpf ogt, %3, %6 : vector<8x128xf32>
    %cst_4 = arith.constant 0.000000e+00 : f32
    %8 = vector.broadcast %cst_4 : f32 to vector<8x128xf32>
    %9 = arith.select %7, %5, %8 : vector<8x128xi1>, vector<8x128xf32>
    %10 = arith.mulf %9, %9 : vector<8x128xf32>
    %c0_5 = arith.constant 0 : index
    %c0_6 = arith.constant 0 : index
    %11 = vector.load %arg4[%c0_5, %c0_6] : memref<8x128xf32, #tpu.memory_space<vmem>>, vector<8x128xf32>
    %12 = vector.shape_cast %10 : vector<8x128xf32> to vector<1x8x128xf32>
    %cst_7 = arith.constant dense<0.000000e+00> : vector<8x128xf32>
    %13 = vector.multi_reduction <add>, %12, %cst_7 [0] : vector<1x8x128xf32> to vector<8x128xf32>
    %14 = arith.addf %11, %13 : vector<8x128xf32>
    %c0_8 = arith.constant 0 : index
    %c0_9 = arith.constant 0 : index
    %15 = vector.load %arg4[%c0_8, %c0_9] : memref<8x128xf32, #tpu.memory_space<vmem>>, vector<8x128xf32>
    tpu.vector_store %arg4[%c0_8, %c0_9], %14 {strides = array<i32>} : memref<8x128xf32, #tpu.memory_space<vmem>>, vector<8x128xf32>,
    return
  }
  func.func @transform_0(%arg0: i32, %arg1: i32) -> (i32, i32) {
    %c1_i32 = arith.constant 1 : i32
    %0 = arith.muli %arg0, %c1_i32 : i32
    %1 = arith.addi %0, %arg1 : i32
    %c0_i32 = arith.constant 0 : i32
    %c0_i32_0 = arith.constant 0 : i32
    return %1, %c0_i32 : i32, i32
  }
  func.func @transform_1(%arg0: i32, %arg1: i32) -> (i32, i32) {
    %c1_i32 = arith.constant 1 : i32
    %0 = arith.muli %arg0, %c1_i32 : i32
    %1 = arith.addi %0, %arg1 : i32
    %c0_i32 = arith.constant 0 : i32
    %c0_i32_0 = arith.constant 0 : i32
    return %1, %c0_i32 : i32, i32
  }
  func.func @transform_2(%arg0: i32, %arg1: i32) -> (i32, i32) {
    %c0_i32 = arith.constant 0 : i32
    %c0_i32_0 = arith.constant 0 : i32
    return %arg0, %c0_i32 : i32, i32
  }
}

</mosaic_0001>

<llo_original>
// kernel: mse_and_sci_loss.5
$region0: #{mse_and_sci_loss.5}
  #allocation0 [shape = 'u32[]', space=smem, size = 0x4, offset = 0x4, fixed_abs, tag = 'smem constant byte address 0x4 - core index']
  #allocation1 [shape = 'u32[72,128]{1,0:T(1,128)}', space=vmem, size = 0x9000, scoped, tag = 'internal scratch']
  %s0 = inlined_call_operand.vmem [shape: f32[16,128], index: 0, kind: input, shape index: {}]
  %s1 = inlined_call_operand.vmem [shape: f32[16,128], index: 1, kind: input, shape index: {}]
  %s2 = inlined_call_operand.vmem [shape: f32[8,128], index: 2, kind: output, shape index: {}]
  %s3 = sld [smem:[#allocation0]]
  $region22: #{mse_and_sci_loss.5} parent=0
    _
  %s5 = ssub.s32 1, %s3
  %s6 = scalar_select 0, %s5, %s3
  // Predicated region
  $region2: #{mse_and_sci_loss.5} parent=0 // pred_check
    _
  $region3: #{mse_and_sci_loss.5} parent=0 // pred_check_branch
    %8 = sbr.rel (0) target = $region5
  $region4: #{mse_and_sci_loss.5} parent=0 // pred_region
    %s9 = sadd.s32 0, 0
    %s10 = smul.u32 2, %s9
    %p11 = scmp.lt.s32.totalorder %s10, 1
    %s12 = scalar_select %p11, %s10, 1
    %s13 = smul.addr %s12, 8
    %s14 = scalar_lea.vmem %s0, %s13
    %s15 = sadd.s32 0, 0
    %s16 = smul.u32 2, %s15
  $region5: #{mse_and_sci_loss.5} parent=0 // pred_fallthru
    _
  // Predicated region
  $region6: #{mse_and_sci_loss.5} parent=0 // pred_check
    _
  $region7: #{mse_and_sci_loss.5} parent=0 // pred_check_branch
    %18 = sbr.rel (0) target = $region9
  $region8: #{mse_and_sci_loss.5} parent=0 // pred_region
    %s19 = sadd.s32 0, 0
    %s20 = smul.u32 2, %s19
    %p21 = scmp.lt.s32.totalorder %s20, 1
    %s22 = scalar_select %p21, %s20, 1
    %s23 = smul.addr %s22, 8
    %s24 = scalar_lea.vmem %s1, %s23
    %s25 = sadd.s32 0, 0
    %s26 = smul.u32 2, %s25
  $region9: #{mse_and_sci_loss.5} parent=0 // pred_fallthru
    _
  %s27 = sadd.s32 0, 0
  %s28 = smul.u32 2, %s27
  %p29 = scmp.lt.s32.totalorder %s28, 1
  %s30 = scalar_select %p29, %s28, 1
  %s31 = smul.addr %s30, 8
  %s32 = scalar_lea.vmem %s0, %s31
  %s33 = sadd.s32 0, 0
  %s34 = smul.u32 2, %s33
  %p35 = scmp.lt.s32.totalorder %s34, 1
  %s36 = scalar_select %p35, %s34, 1
  %s37 = smul.addr %s36, 8
  %s38 = scalar_lea.vmem %s1, %s37
  %s39 = sadd.s32 0, 0
  %s40 = smul.u32 2, %s39
  %p41 = scmp.lt.s32.totalorder %s40, 1
  %s42 = scalar_select %p41, %s40, 1
  %s43 = smul.addr %s42, 8
  %s44 = scalar_lea.vmem %s0, %s43
  %s45 = sadd.s32 0, 0
  %s46 = smul.u32 2, %s45
  %s47 = sadd.s32 0, 0
  %s48 = smul.u32 2, %s47
  %p49 = scmp.lt.s32.totalorder %s48, 1
  %s50 = scalar_select %p49, %s48, 1
  %s51 = smul.addr %s50, 8
  %s52 = scalar_lea.vmem %s1, %s51
  %s53 = sadd.s32 0, 0
  %s54 = smul.u32 2, %s53
  %p55 = scmp.eq.s32.totalorder 0, 0
  // Predicated region
  $region10: #{mse_and_sci_loss.5} parent=0 // pred_check
    %p56 = pneg %p55
  $region11: #{mse_and_sci_loss.5} parent=0 // pred_check_branch
    %58 = sbr.rel (%p56) target = $region13
  $region12: #{mse_and_sci_loss.5} parent=0 // pred_region
    %59 = vst [vmem:[%s2] sm:$0xff] 0.0
  $region13: #{mse_and_sci_loss.5} parent=0 // pred_fallthru
    _
  %v60 = vld [vmem:[%s44] sm:$0xff]
  %v61 = vld [vmem:[%s44 + $0x8] sm:$0xff]
  %v62 = vld [vmem:[%s52] sm:$0xff]
  %v63 = vld [vmem:[%s52 + $0x8] sm:$0xff]
  %v64 = vsub.f32 %v60, %v62
  %v65 = vsub.f32 %v61, %v63
  %v66 = vmul.f32 %v64, %v64
  %v67 = vmul.f32 %v65, %v65
  %v68 = vld [vmem:[%s2] sm:$0xff]
  %v69 = vadd.f32 %v66, %v67
  %v70 = vadd.f32 %v68, %v69
  %71 = vst [vmem:[%s2] sm:$0xff] %v70
  // Predicated region
  $region14: #{mse_and_sci_loss.5} parent=0 // pred_check
    _
  $region15: #{mse_and_sci_loss.5} parent=0 // pred_check_branch
    %73 = sbr.rel (0) target = $region17
  $region16: #{mse_and_sci_loss.5} parent=0 // pred_region
    _
  $region17: #{mse_and_sci_loss.5} parent=0 // pred_fallthru
    _
  // Predicated region
  $region18: #{mse_and_sci_loss.5} parent=0 // pred_check
    _
  $region19: #{mse_and_sci_loss.5} parent=0 // pred_check_branch
    %75 = sbr.rel (0) target = $region21
  $region20: #{mse_and_sci_loss.5} parent=0 // pred_region
    _
  $region21: #{mse_and_sci_loss.5} parent=0 // pred_fallthru
    _

// kernel: mse_and_sci_loss.4
$region0: #{mse_and_sci_loss.4}
  #allocation0 [shape = 'u32[]', space=smem, size = 0x4, offset = 0x4, fixed_abs, tag = 'smem constant byte address 0x4 - core index']
  #allocation1 [shape = 'u32[72,128]{1,0:T(1,128)}', space=vmem, size = 0x9000, scoped, tag = 'internal scratch']
  %s0 = inlined_call_operand.vmem [shape: f32[8,128], index: 0, kind: input, shape index: {}]
  %s1 = inlined_call_operand.vmem [shape: f32[8,128], index: 1, kind: input, shape index: {}]
  %s2 = inlined_call_operand.vmem [shape: f32[8,128], index: 2, kind: output, shape index: {}]
  %s3 = sld [smem:[#allocation0]]
  $region22: #{mse_and_sci_loss.4} parent=0
    _
  %s5 = ssub.s32 1, %s3
  %s6 = scalar_select 0, %s5, %s3
  // Predicated region
  $region2: #{mse_and_sci_loss.4} parent=0 // pred_check
    _
  $region3: #{mse_and_sci_loss.4} parent=0 // pred_check_branch
    %8 = sbr.rel (0) target = $region5
  $region4: #{mse_and_sci_loss.4} parent=0 // pred_region
    %s9 = sadd.s32 0, 0
    %p10 = scmp.lt.s32.totalorder %s9, 0
    %s11 = scalar_select %p10, %s9, 0
    %s12 = smul.addr %s11, 8
    %s13 = scalar_lea.vmem %s0, %s12
    %s14 = sadd.s32 0, 0
  $region5: #{mse_and_sci_loss.4} parent=0 // pred_fallthru
    _
  // Predicated region
  $region6: #{mse_and_sci_loss.4} parent=0 // pred_check
    _
  $region7: #{mse_and_sci_loss.4} parent=0 // pred_check_branch
    %16 = sbr.rel (0) target = $region9
  $region8: #{mse_and_sci_loss.4} parent=0 // pred_region
    %s17 = sadd.s32 0, 0
    %p18 = scmp.lt.s32.totalorder %s17, 0
    %s19 = scalar_select %p18, %s17, 0
    %s20 = smul.addr %s19, 8
    %s21 = scalar_lea.vmem %s1, %s20
    %s22 = sadd.s32 0, 0
  $region9: #{mse_and_sci_loss.4} parent=0 // pred_fallthru
    _
  %s23 = sadd.s32 0, 0
  %p24 = scmp.lt.s32.totalorder %s23, 0
  %s25 = scalar_select %p24, %s23, 0
  %s26 = smul.addr %s25, 8
  %s27 = scalar_lea.vmem %s0, %s26
  %s28 = sadd.s32 0, 0
  %p29 = scmp.lt.s32.totalorder %s28, 0
  %s30 = scalar_select %p29, %s28, 0
  %s31 = smul.addr %s30, 8
  %s32 = scalar_lea.vmem %s1, %s31
  %s33 = sadd.s32 0, 0
  %p34 = scmp.lt.s32.totalorder %s33, 0
  %s35 = scalar_select %p34, %s33, 0
  %s36 = smul.addr %s35, 8
  %s37 = scalar_lea.vmem %s0, %s36
  %s38 = sadd.s32 0, 0
  %s39 = sadd.s32 0, 0
  %p40 = scmp.lt.s32.totalorder %s39, 0
  %s41 = scalar_select %p40, %s39, 0
  %s42 = smul.addr %s41, 8
  %s43 = scalar_lea.vmem %s1, %s42
  %s44 = sadd.s32 0, 0
  %p45 = scmp.eq.s32.totalorder 0, 0
  // Predicated region
  $region10: #{mse_and_sci_loss.4} parent=0 // pred_check
    %p46 = pneg %p45
  $region11: #{mse_and_sci_loss.4} parent=0 // pred_check_branch
    %48 = sbr.rel (%p46) target = $region13
  $region12: #{mse_and_sci_loss.4} parent=0 // pred_region
    %49 = vst [vmem:[%s2] sm:$0xff] 0.0
  $region13: #{mse_and_sci_loss.4} parent=0 // pred_fallthru
    _
  %v50 = vld [vmem:[%s37] sm:$0xff]
  %v51 = vld [vmem:[%s43] sm:$0xff]
  %v52 = vsub.f32 %v50, %v51
  %vm53 = vcmp.gt.f32.partialorder %v50, 0.001
  %v54 = vsel %vm53, %v52, 0.0
  %v55 = vmul.f32 %v54, %v54
  %v56 = vld [vmem:[%s2] sm:$0xff]
  %v57 = vadd.f32 %v55, 0.0
  %v58 = vadd.f32 %v56, %v57
  %59 = vst [vmem:[%s2] sm:$0xff] %v58
  // Predicated region
  $region14: #{mse_and_sci_loss.4} parent=0 // pred_check
    _
  $region15: #{mse_and_sci_loss.4} parent=0 // pred_check_branch
    %61 = sbr.rel (0) target = $region17
  $region16: #{mse_and_sci_loss.4} parent=0 // pred_region
    _
  $region17: #{mse_and_sci_loss.4} parent=0 // pred_fallthru
    _
  // Predicated region
  $region18: #{mse_and_sci_loss.4} parent=0 // pred_check
    _
  $region19: #{mse_and_sci_loss.4} parent=0 // pred_check_branch
    %63 = sbr.rel (0) target = $region21
  $region20: #{mse_and_sci_loss.4} parent=0 // pred_region
    _
  $region21: #{mse_and_sci_loss.4} parent=0 // pred_fallthru
    _

</llo_original>
